<compile_context>
chip_gen: v6e
topology: v6e:2x2x1
jax: 0.10.0
libtpu: 0.0.40
codegen_flags: <defaults>
</compile_context>

<pallas_src>
import jax
import jax.numpy as jnp
from jax.experimental import pallas as pl
from jax.experimental.pallas import tpu as pltpu

# ---------------------------------------------------------------------------
# Model dimensions (small, consistent with the module's usage in the model).
# ---------------------------------------------------------------------------
X_DIM = 16                     # x_dim
Z_OUT = 16                     # encoder z_dim (latent part appended to x)
HID = 32                       # hid_units
ENC_Q = X_DIM // 2             # q_dim = x_dim // 2
OUT_DIM = X_DIM + Z_OUT        # encoder output width = 32

# Packed-parameter layout (single operand, one DMA):
#   rows   0:32  -> [ W1 (cols 0:8) | 0 | b1 (col 32) ]
#   rows  32:64  -> [ W2 (cols 0:32)    | b2 (col 32) ]
#   rows  64:80  -> [ Wout (cols 0:32)  | 0           ]
P_ROWS = 2 * HID + Z_OUT       # 80
P_COLS = HID + 8               # 40 (col 32 holds the biases)
BIAS_COL = HID                 # 32

# Tiling policy (see header): gridless up to 2048 padded rows, else 1024-lane
# tiles on a "parallel" grid axis.
GRIDLESS_MAX_B = 2048
TILE_B = 1024


# ---------------------------------------------------------------------------
# Pallas kernel (transposed / batch-on-lanes layout)
# ---------------------------------------------------------------------------
def _encoder_kernel(xt_ref, p_ref, ot_ref):
    """One lane-tile of the batch.

    xt_ref : [X_DIM, Bt]   (batch on lanes, Bt multiple of 128)
    p_ref  : [P_ROWS, P_COLS] packed parameters (static slices below)
    ot_ref : [OUT_DIM, Bt]
    """
    xt = xt_ref[...]                                      # [16, Bt]
    qt = xt[0:ENC_Q, :]                                   # [8,  Bt] sublane slice

    w1 = p_ref[0:HID, 0:ENC_Q]                            # [32, 8]
    b1 = p_ref[0:HID, BIAS_COL:BIAS_COL + 1]              # [32, 1]
    w2 = p_ref[HID:2 * HID, 0:HID]                        # [32, 32]
    b2 = p_ref[HID:2 * HID, BIAS_COL:BIAS_COL + 1]        # [32, 1]
    wout = p_ref[2 * HID:P_ROWS, 0:HID]                   # [16, 32]

    h1 = jnp.tanh(jnp.dot(w1, qt, preferred_element_type=jnp.float32) + b1)
    h2 = jnp.tanh(jnp.dot(w2, h1, preferred_element_type=jnp.float32) + b2)
    zo = jnp.dot(wout, h2, preferred_element_type=jnp.float32)   # [16, Bt]

    # Both stores are full lane width (Bt lanes) at sublane offsets 0 / 16
    # (multiples of 8) -> unmasked, lane-dense vst.
    ot_ref[0:X_DIM, :] = xt
    ot_ref[X_DIM:OUT_DIM, :] = zo


# ---------------------------------------------------------------------------
# One-time parameter prep: pack everything into a single operand.
# Weights keep PyTorch's [out, in] orientation (no per-call transposes).
# ---------------------------------------------------------------------------
def prep_encoder_params(params):
    packed = jnp.zeros((P_ROWS, P_COLS), jnp.float32)
    packed = packed.at[0:HID, 0:ENC_Q].set(params["enc_w1"].astype(jnp.float32))
    packed = packed.at[0:HID, BIAS_COL].set(params["enc_b1"].astype(jnp.float32))
    packed = packed.at[HID:2 * HID, 0:HID].set(params["enc_w2"].astype(jnp.float32))
    packed = packed.at[HID:2 * HID, BIAS_COL].set(params["enc_b2"].astype(jnp.float32))
    packed = packed.at[2 * HID:P_ROWS, 0:HID].set(params["enc_wout"].astype(jnp.float32))
    return packed


# ---------------------------------------------------------------------------
# Wrapper
# ---------------------------------------------------------------------------
@jax.jit
def encoder_forward(x, packed_params):
    x = x.astype(jnp.float32)
    b = x.shape[0]

    # Pad the batch (lane axis) — gridless for small/moderate B on every
    # generation; capped 1024-lane tiles for large B.
    if b <= GRIDLESS_MAX_B:
        bp = ((b + 127) // 128) * 128
        gridless = True
    else:
        bp = ((b + TILE_B - 1) // TILE_B) * TILE_B
        gridless = False

    xt = jnp.zeros((X_DIM, bp), jnp.float32).at[:, :b].set(x.T)
    out_shape = jax.ShapeDtypeStruct((OUT_DIM, bp), jnp.float32)

    if gridless:
        vmem = pl.BlockSpec(memory_space=pltpu.MemorySpace.VMEM)
        ot = pl.pallas_call(
            _encoder_kernel,
            out_shape=out_shape,
            in_specs=[vmem, vmem],
            out_specs=vmem,
        )(xt, packed_params)
    else:
        ot = pl.pallas_call(
            _encoder_kernel,
            out_shape=out_shape,
            grid=(bp // TILE_B,),
            in_specs=[
                pl.BlockSpec((X_DIM, TILE_B), lambda i: (0, i)),
                pl.BlockSpec((P_ROWS, P_COLS), lambda i: (0, 0)),  # resident
            ],
            out_specs=pl.BlockSpec((OUT_DIM, TILE_B), lambda i: (0, i)),
            compiler_params=pltpu.CompilerParams(
                dimension_semantics=("parallel",)),
        )(xt, packed_params)

    return ot[:, :b].T                                    # [B, OUT_DIM] f32


# ---------------------------------------------------------------------------
# Pure-JAX reference (mirrors the PyTorch forward, minus the .double() cast).
# ---------------------------------------------------------------------------
def encoder_reference(x, p):
    x = x.astype(jnp.float32)
    q = x[:, :ENC_Q]
    h1 = jnp.tanh(q @ p["enc_w1"].T + p["enc_b1"])
    h2 = jnp.tanh(h1 @ p["enc_w2"].T + p["enc_b2"])
    return jnp.concatenate([x, h2 @ p["enc_wout"].T], axis=1)


# ---------------------------------------------------------------------------
# Deterministic parameter init (PyTorch-style uniform(-1/sqrt(in), 1/sqrt(in)))
# ---------------------------------------------------------------------------
def init_params(key):
    def lin(k, out_f, in_f, bias):
        kw, kb = jax.random.split(k)
        bound = 1.0 / jnp.sqrt(jnp.float32(in_f))
        w = jax.random.uniform(kw, (out_f, in_f), jnp.float32, -bound, bound)
        if bias:
            b = jax.random.uniform(kb, (out_f,), jnp.float32, -bound, bound)
            return w, b
        return w, None

    keys = jax.random.split(key, 3)
    p = {}
    p["enc_w1"], p["enc_b1"] = lin(keys[0], HID, ENC_Q, True)
    p["enc_w2"], p["enc_b2"] = lin(keys[1], HID, HID, True)
    p["enc_wout"], _ = lin(keys[2], Z_OUT, HID, False)
    return p


# ---------------------------------------------------------------------------
if __name__ == "__main__":
    key = jax.random.PRNGKey(0)
    k_p, k_x1, k_x2 = jax.random.split(key, 3)
    params = init_params(k_p)
    packed = prep_encoder_params(params)      # one-time prep, single operand

    # Small batch consistent with the module's usage (gridless path).
    B = 8
    x = jax.random.normal(k_x1, (B, X_DIM), jnp.float32)
    z = encoder_forward(x, packed)
    jax.block_until_ready(z)
    z_ref = encoder_reference(x, params)
    assert z.shape == (B, OUT_DIM)
    assert jnp.allclose(z, z_ref, atol=1e-5, rtol=1e-5)

    # Larger, unaligned batch to exercise the tiled ("parallel" grid) path.
    B2 = 2500
    x2 = jax.random.normal(k_x2, (B2, X_DIM), jnp.float32)
    z2 = encoder_forward(x2, packed)
    jax.block_until_ready(z2)
    z2_ref = encoder_reference(x2, params)
    assert z2.shape == (B2, OUT_DIM)
    assert jnp.allclose(z2, z2_ref, atol=1e-5, rtol=1e-5)

    print("KERNEL_OK")
</pallas_src>

<mosaic_0001>
module attributes {stable_mosaic.version = 11 : i64} {
  func.func @_encoder_kernel(%arg0: memref<16x128xf32, #tpu.memory_space<vmem>>, %arg1: memref<80x40xf32, #tpu.memory_space<vmem>>, %arg2: memref<32x128xf32, #tpu.memory_space<vmem>>) attributes {dimension_semantics = [], scalar_prefetch = 0 : i64, scratch_operands = 0 : i64, tpu.core_type = #tpu.core_type<tc>} {
    %c0 = arith.constant 0 : index
    %c0_0 = arith.constant 0 : index
    %0 = vector.load %arg0[%c0, %c0_0] : memref<16x128xf32, #tpu.memory_space<vmem>>, vector<16x128xf32>
    %1 = vector.extract_strided_slice %0 {offsets = [0, 0], sizes = [8, 128], strides = [1, 1]} : vector<16x128xf32> to vector<8x128xf32>
    %c0_1 = arith.constant 0 : index
    %c0_2 = arith.constant 0 : index
    %2 = vector.load %arg1[%c0_1, %c0_2] : memref<80x40xf32, #tpu.memory_space<vmem>>, vector<32x8xf32>
    %c0_3 = arith.constant 0 : index
    %c32 = arith.constant 32 : index
    %3 = vector.load %arg1[%c0_3, %c32] : memref<80x40xf32, #tpu.memory_space<vmem>>, vector<32x1xf32>
    %c32_4 = arith.constant 32 : index
    %c0_5 = arith.constant 0 : index
    %4 = vector.load %arg1[%c32_4, %c0_5] : memref<80x40xf32, #tpu.memory_space<vmem>>, vector<32x32xf32>
    %c32_6 = arith.constant 32 : index
    %c32_7 = arith.constant 32 : index
    %5 = vector.load %arg1[%c32_6, %c32_7] : memref<80x40xf32, #tpu.memory_space<vmem>>, vector<32x1xf32>
    %c64 = arith.constant 64 : index
    %c0_8 = arith.constant 0 : index
    %6 = vector.load %arg1[%c64, %c0_8] : memref<80x40xf32, #tpu.memory_space<vmem>>, vector<16x32xf32>
    %cst = arith.constant dense<0.000000e+00> : vector<32x128xf32>
    %7 = tpu.matmul %2, %1, %cst {dimension_numbers = #tpu.dot_dimension_numbers<[1], [0], [0], [1], [0, 0, 1, 1], [], []>} : vector<32x8xf32>, vector<8x128xf32>, vector<32x128xf32> -> vector<32x128xf32>
    %8 = vector.broadcast %3 : vector<32x1xf32> to vector<32x128xf32>
    %9 = arith.addf %7, %8 : vector<32x128xf32>
    %10 = math.tanh %9 : vector<32x128xf32>
    %cst_9 = arith.constant dense<0.000000e+00> : vector<32x128xf32>
    %11 = tpu.matmul %4, %10, %cst_9 {dimension_numbers = #tpu.dot_dimension_numbers<[1], [0], [0], [1], [0, 0, 1, 1], [], []>} : vector<32x32xf32>, vector<32x128xf32>, vector<32x128xf32> -> vector<32x128xf32>
    %12 = vector.broadcast %5 : vector<32x1xf32> to vector<32x128xf32>
    %13 = arith.addf %11, %12 : vector<32x128xf32>
    %14 = math.tanh %13 : vector<32x128xf32>
    %cst_10 = arith.constant dense<0.000000e+00> : vector<16x128xf32>
    %15 = tpu.matmul %6, %14, %cst_10 {dimension_numbers = #tpu.dot_dimension_numbers<[1], [0], [0], [1], [0, 0, 1, 1], [], []>} : vector<16x32xf32>, vector<32x128xf32>, vector<16x128xf32> -> vector<16x128xf32>
    %c0_11 = arith.constant 0 : index
    %c0_12 = arith.constant 0 : index
    %16 = vector.load %arg2[%c0_11, %c0_12] : memref<32x128xf32, #tpu.memory_space<vmem>>, vector<16x128xf32>
    tpu.vector_store %arg2[%c0_11, %c0_12], %0 {strides = array<i32>} : memref<32x128xf32, #tpu.memory_space<vmem>>, vector<16x128xf32>,
    %c16 = arith.constant 16 : index
    %c0_13 = arith.constant 0 : index
    %17 = vector.load %arg2[%c16, %c0_13] : memref<32x128xf32, #tpu.memory_space<vmem>>, vector<16x128xf32>
    tpu.vector_store %arg2[%c16, %c0_13], %15 {strides = array<i32>} : memref<32x128xf32, #tpu.memory_space<vmem>>, vector<16x128xf32>,
    return
  }
}

</mosaic_0001>

<llo_original>
// kernel: encoder_forward.1
$region0: #{encoder_forward.1}
  #allocation0 [shape = 'u32[]', space=smem, size = 0x4, offset = 0x4, fixed_abs, tag = 'smem constant byte address 0x4 - core index']
  #allocation1 [shape = 'u32[144,128]{1,0:T(1,128)}', space=vmem, size = 0x12000, scoped, tag = 'internal scratch']
  %s0 = inlined_call_operand.vmem [shape: f32[16,128], index: 0, kind: input, shape index: {}]
  %s1 = inlined_call_operand.vmem [shape: f32[80,40], index: 1, kind: input, shape index: {}]
  %s2 = inlined_call_operand.vmem [shape: f32[32,128], index: 2, kind: output, shape index: {}]
  %s3 = sld [smem:[#allocation0]]
  $region18: #{encoder_forward.1} parent=0
    _
  %s5 = ssub.s32 1, %s3
  %s6 = scalar_select 0, %s5, %s3
  // Predicated region
  $region2: #{encoder_forward.1} parent=0 // pred_check
    _
  $region3: #{encoder_forward.1} parent=0 // pred_check_branch
    %8 = sbr.rel (0) target = $region5
  $region4: #{encoder_forward.1} parent=0 // pred_region
    _
  $region5: #{encoder_forward.1} parent=0 // pred_fallthru
    _
  // Predicated region
  $region6: #{encoder_forward.1} parent=0 // pred_check
    _
  $region7: #{encoder_forward.1} parent=0 // pred_check_branch
    %10 = sbr.rel (0) target = $region9
  $region8: #{encoder_forward.1} parent=0 // pred_region
    _
  $region9: #{encoder_forward.1} parent=0 // pred_fallthru
    _
  %v11 = vld [vmem:[%s0] sm:$0xff]
  %v12 = vld [vmem:[%s0 + $0x8] sm:$0xff]
  %v13 = vld [vmem:[%s1] sm:$0xff]
  %v14 = vld [vmem:[%s1 + $0x8] sm:$0xff]
  %v15 = vld [vmem:[%s1 + $0x10] sm:$0xff]
  %v16 = vld [vmem:[%s1 + $0x18] sm:$0xff]
  %v17 = vld [vmem:[%s1 + $0x20] sm:$0xff]
  %v18 = vld [vmem:[%s1 + $0x28] sm:$0xff]
  %v19 = vld [vmem:[%s1 + $0x30] sm:$0xff]
  %v20 = vld [vmem:[%s1 + $0x38] sm:$0xff]
  %v21 = vld [vmem:[%s1 + $0x40] sm:$0xff]
  %v22 = vld [vmem:[%s1 + $0x48] sm:$0xff]
  %24 = vset.pattern.permute.xlu0 32
  %25 = vperm.xlu0 %24, %v13
  %v26 = vpop.permute.xlu0 %25
  %29 = vset.pattern.permute.xlu0 32
  %30 = vperm.xlu0 %29, %v14
  %v31 = vpop.permute.xlu0 %30
  %34 = vset.pattern.permute.xlu0 32
  %35 = vperm.xlu0 %34, %v15
  %v36 = vpop.permute.xlu0 %35
  %39 = vset.pattern.permute.xlu0 32
  %40 = vperm.xlu0 %39, %v16
  %v41 = vpop.permute.xlu0 %40
  %vm43 = vcmask 64512
  %v44 = vsel %vm43, %v13, 0
  %v46 = vsel %vm43, %v14, 0
  %v48 = vsel %vm43, %v15, 0
  %v50 = vsel %vm43, %v16, 0
  %52 = vmatprep.subr.mxu0 0.0
  %53 = vmatpush1.msra.mxu0 0.0
  %54 = vmatprep.subr.mxu0 0.0
  %55 = vmatpush1.msra.mxu0 0.0
  %56 = vmatprep.subr.mxu0 0.0
  %57 = vmatpush1.msra.mxu0 0.0
  %58 = vmatprep.subr.mxu0 0.0
  %59 = vmatpush1.msra.mxu0 0.0
  %60 = vmatprep.subr.mxu0 0.0
  %61 = vmatpush1.msra.mxu0 0.0
  %62 = vmatprep.subr.mxu0 0.0
  %63 = vmatpush1.msra.mxu0 0.0
  %64 = vmatprep.subr.mxu0 0.0
  %65 = vmatpush1.msra.mxu0 0.0
  %66 = vmatprep.subr.mxu0 0.0
  %67 = vmatpush1.msra.mxu0 0.0
  %68 = vmatprep.subr.mxu0 0.0
  %69 = vmatpush1.msra.mxu0 0.0
  %70 = vmatprep.subr.mxu0 0.0
  %71 = vmatpush1.msra.mxu0 0.0
  %72 = vmatprep.subr.mxu0 0.0
  %73 = vmatpush1.msra.mxu0 0.0
  %74 = vmatprep.subr.mxu0 0.0
  %75 = vmatpush1.msra.mxu0 0.0
  %76 = vmatprep.subr.mxu0 0.0
  %77 = vmatpush1.msra.mxu0 0.0
  %78 = vmatprep.subr.mxu0 0.0
  %79 = vmatpush1.msra.mxu0 0.0
  %80 = vmatprep.subr.mxu0 0.0
  %81 = vmatpush1.msra.mxu0 0.0
  %82 = vmatprep.subr.mxu0 0.0
  %83 = vmatpush1.msra.mxu0 %v11
  %84 = vmatprep.subr.mxu0 0.0
  %85 = vmatpush2.msra.mxu0 0.0
  %86 = vmatprep.subr.mxu0 0.0
  %87 = vmatpush2.msra.mxu0 0.0
  %88 = vmatprep.subr.mxu0 0.0
  %89 = vmatpush2.msra.mxu0 0.0
  %90 = vmatprep.subr.mxu0 0.0
  %91 = vmatpush2.msra.mxu0 0.0
  %92 = vmatprep.subr.mxu0 0.0
  %93 = vmatpush2.msra.mxu0 0.0
  %94 = vmatprep.subr.mxu0 0.0
  %95 = vmatpush2.msra.mxu0 0.0
  %96 = vmatprep.subr.mxu0 0.0
  %97 = vmatpush2.msra.mxu0 0.0
  %98 = vmatprep.subr.mxu0 0.0
  %99 = vmatpush2.msra.mxu0 0.0
  %100 = vmatprep.subr.mxu0 0.0
  %101 = vmatpush2.msra.mxu0 0.0
  %102 = vmatprep.subr.mxu0 0.0
  %103 = vmatpush2.msra.mxu0 0.0
  %104 = vmatprep.subr.mxu0 0.0
  %105 = vmatpush2.msra.mxu0 0.0
  %106 = vmatprep.subr.mxu0 0.0
  %107 = vmatpush2.msra.mxu0 0.0
  %108 = vmatprep.subr.mxu0 0.0
  %109 = vmatpush2.msra.mxu0 0.0
  %110 = vmatprep.subr.mxu0 0.0
  %111 = vmatpush2.msra.mxu0 0.0
  %112 = vmatprep.subr.mxu0 0.0
  %113 = vmatpush2.msra.mxu0 0.0
  %114 = vmatprep.subr.mxu0 0.0
  %115 = vmatpush2.msra.mxu0 0.0
  %116 = vmatprep.mubr.f32.mxu0 0.0
  %117 = vmatmul.mubr.f32.gmra.mxu0 %v44
  %v118 = vpop.f32.mrf.mxu0
  %v119 = vadd.f32 %v26, %v118
  %v120 = vpop.f32.mrf.mxu0
  %121 = vmatprep.mubr.f32.mxu0 0.0
  %122 = vmatmul.mubr.f32.gmra.mxu0 %v46
  %v123 = vpop.f32.mrf.mxu0
  %v124 = vadd.f32 %v31, %v123
  %v125 = vpop.f32.mrf.mxu0
  %126 = vmatprep.mubr.f32.mxu0 0.0
  %127 = vmatmul.mubr.f32.gmra.mxu0 %v48
  %v128 = vpop.f32.mrf.mxu0
  %v129 = vadd.f32 %v36, %v128
  %v130 = vpop.f32.mrf.mxu0
  %131 = vmatprep.mubr.f32.mxu0 0.0
  %132 = vmatmul.mubr.f32.gmra.mxu0 %v50
  %v133 = vpop.f32.mrf.mxu0
  %v134 = vadd.f32 %v41, %v133
  %v135 = vpop.f32.mrf.mxu0
  %136 = vdwg.mxu0
  %v137 = vtanh.pop %v119
  %v138 = vtanh.pop %v124
  %v139 = vtanh.pop %v129
  %v140 = vtanh.pop %v134
  %142 = vset.pattern.permute.xlu0 32
  %143 = vperm.xlu0 %142, %v17
  %v144 = vpop.permute.xlu0 %143
  %147 = vset.pattern.permute.xlu0 32
  %148 = vperm.xlu0 %147, %v18
  %v149 = vpop.permute.xlu0 %148
  %152 = vset.pattern.permute.xlu0 32
  %153 = vperm.xlu0 %152, %v19
  %v154 = vpop.permute.xlu0 %153
  %157 = vset.pattern.permute.xlu0 32
  %158 = vperm.xlu0 %157, %v20
  %v159 = vpop.permute.xlu0 %158
  %vm161 = vcmask 261120
  %v162 = vsel %vm161, %v17, 0
  %v164 = vsel %vm161, %v18, 0
  %v166 = vsel %vm161, %v19, 0
  %v168 = vsel %vm161, %v20, 0
  %170 = vmatprep.subr.mxu0 0.0
  %171 = vmatpush1.msra.mxu0 0.0
  %172 = vmatprep.subr.mxu0 0.0
  %173 = vmatpush1.msra.mxu0 0.0
  %174 = vmatprep.subr.mxu0 0.0
  %175 = vmatpush1.msra.mxu0 0.0
  %176 = vmatprep.subr.mxu0 0.0
  %177 = vmatpush1.msra.mxu0 0.0
  %178 = vmatprep.subr.mxu0 0.0
  %179 = vmatpush1.msra.mxu0 0.0
  %180 = vmatprep.subr.mxu0 0.0
  %181 = vmatpush1.msra.mxu0 0.0
  %182 = vmatprep.subr.mxu0 0.0
  %183 = vmatpush1.msra.mxu0 0.0
  %184 = vmatprep.subr.mxu0 0.0
  %185 = vmatpush1.msra.mxu0 0.0
  %186 = vmatprep.subr.mxu0 0.0
  %187 = vmatpush1.msra.mxu0 0.0
  %188 = vmatprep.subr.mxu0 0.0
  %189 = vmatpush1.msra.mxu0 0.0
  %190 = vmatprep.subr.mxu0 0.0
  %191 = vmatpush1.msra.mxu0 0.0
  %192 = vmatprep.subr.mxu0 0.0
  %193 = vmatpush1.msra.mxu0 0.0
  %194 = vmatprep.subr.mxu0 0.0
  %195 = vmatpush1.msra.mxu0 %v140
  %196 = vmatprep.subr.mxu0 0.0
  %197 = vmatpush1.msra.mxu0 %v139
  %198 = vmatprep.subr.mxu0 0.0
  %199 = vmatpush1.msra.mxu0 %v138
  %200 = vmatprep.subr.mxu0 0.0
  %201 = vmatpush1.msra.mxu0 %v137
  %202 = vmatprep.subr.mxu0 0.0
  %203 = vmatpush2.msra.mxu0 0.0
  %204 = vmatprep.subr.mxu0 0.0
  %205 = vmatpush2.msra.mxu0 0.0
  %206 = vmatprep.subr.mxu0 0.0
  %207 = vmatpush2.msra.mxu0 0.0
  %208 = vmatprep.subr.mxu0 0.0
  %209 = vmatpush2.msra.mxu0 0.0
  %210 = vmatprep.subr.mxu0 0.0
  %211 = vmatpush2.msra.mxu0 0.0
  %212 = vmatprep.subr.mxu0 0.0
  %213 = vmatpush2.msra.mxu0 0.0
  %214 = vmatprep.subr.mxu0 0.0
  %215 = vmatpush2.msra.mxu0 0.0
  %216 = vmatprep.subr.mxu0 0.0
  %217 = vmatpush2.msra.mxu0 0.0
  %218 = vmatprep.subr.mxu0 0.0
  %219 = vmatpush2.msra.mxu0 0.0
  %220 = vmatprep.subr.mxu0 0.0
  %221 = vmatpush2.msra.mxu0 0.0
  %222 = vmatprep.subr.mxu0 0.0
  %223 = vmatpush2.msra.mxu0 0.0
  %224 = vmatprep.subr.mxu0 0.0
  %225 = vmatpush2.msra.mxu0 0.0
  %226 = vmatprep.subr.mxu0 0.0
  %227 = vmatpush2.msra.mxu0 0.0
  %228 = vmatprep.subr.mxu0 0.0
  %229 = vmatpush2.msra.mxu0 0.0
  %230 = vmatprep.subr.mxu0 0.0
  %231 = vmatpush2.msra.mxu0 0.0
  %232 = vmatprep.subr.mxu0 0.0
  %233 = vmatpush2.msra.mxu0 0.0
  %234 = vmatprep.mubr.f32.mxu0 0.0
  %235 = vmatmul.mubr.f32.gmra.mxu0 %v162
  %v236 = vpop.f32.mrf.mxu0
  %v237 = vadd.f32 %v144, %v236
  %v238 = vpop.f32.mrf.mxu0
  %239 = vmatprep.mubr.f32.mxu0 0.0
  %240 = vmatmul.mubr.f32.gmra.mxu0 %v164
  %v241 = vpop.f32.mrf.mxu0
  %v242 = vadd.f32 %v149, %v241
  %v243 = vpop.f32.mrf.mxu0
  %244 = vmatprep.mubr.f32.mxu0 0.0
  %245 = vmatmul.mubr.f32.gmra.mxu0 %v166
  %v246 = vpop.f32.mrf.mxu0
  %v247 = vadd.f32 %v154, %v246
  %v248 = vpop.f32.mrf.mxu0
  %249 = vmatprep.mubr.f32.mxu0 0.0
  %250 = vmatmul.mubr.f32.gmra.mxu0 %v168
  %v251 = vpop.f32.mrf.mxu0
  %v252 = vadd.f32 %v159, %v251
  %v253 = vpop.f32.mrf.mxu0
  %254 = vdwg.mxu0
  %v255 = vtanh.pop %v237
  %v256 = vtanh.pop %v242
  %v257 = vtanh.pop %v247
  %v258 = vtanh.pop %v252
  %v260 = vsel %vm161, %v21, 0
  %v263 = vsel %vm161, %v22, 0
  %265 = vmatprep.subr.mxu0 0.0
  %266 = vmatpush1.msra.mxu0 0.0
  %267 = vmatprep.subr.mxu0 0.0
  %268 = vmatpush1.msra.mxu0 0.0
  %269 = vmatprep.subr.mxu0 0.0
  %270 = vmatpush1.msra.mxu0 0.0
  %271 = vmatprep.subr.mxu0 0.0
  %272 = vmatpush1.msra.mxu0 0.0
  %273 = vmatprep.subr.mxu0 0.0
  %274 = vmatpush1.msra.mxu0 0.0
  %275 = vmatprep.subr.mxu0 0.0
  %276 = vmatpush1.msra.mxu0 0.0
  %277 = vmatprep.subr.mxu0 0.0
  %278 = vmatpush1.msra.mxu0 0.0
  %279 = vmatprep.subr.mxu0 0.0
  %280 = vmatpush1.msra.mxu0 0.0
  %281 = vmatprep.subr.mxu0 0.0
  %282 = vmatpush1.msra.mxu0 0.0
  %283 = vmatprep.subr.mxu0 0.0
  %284 = vmatpush1.msra.mxu0 0.0
  %285 = vmatprep.subr.mxu0 0.0
  %286 = vmatpush1.msra.mxu0 0.0
  %287 = vmatprep.subr.mxu0 0.0
  %288 = vmatpush1.msra.mxu0 0.0
  %289 = vmatprep.subr.mxu0 0.0
  %290 = vmatpush1.msra.mxu0 %v258
  %291 = vmatprep.subr.mxu0 0.0
  %292 = vmatpush1.msra.mxu0 %v257
  %293 = vmatprep.subr.mxu0 0.0
  %294 = vmatpush1.msra.mxu0 %v256
  %295 = vmatprep.subr.mxu0 0.0
  %296 = vmatpush1.msra.mxu0 %v255
  %297 = vmatprep.subr.mxu0 0.0
  %298 = vmatpush2.msra.mxu0 0.0
  %299 = vmatprep.subr.mxu0 0.0
  %300 = vmatpush2.msra.mxu0 0.0
  %301 = vmatprep.subr.mxu0 0.0
  %302 = vmatpush2.msra.mxu0 0.0
  %303 = vmatprep.subr.mxu0 0.0
  %304 = vmatpush2.msra.mxu0 0.0
  %305 = vmatprep.subr.mxu0 0.0
  %306 = vmatpush2.msra.mxu0 0.0
  %307 = vmatprep.subr.mxu0 0.0
  %308 = vmatpush2.msra.mxu0 0.0
  %309 = vmatprep.subr.mxu0 0.0
  %310 = vmatpush2.msra.mxu0 0.0
  %311 = vmatprep.subr.mxu0 0.0
  %312 = vmatpush2.msra.mxu0 0.0
  %313 = vmatprep.subr.mxu0 0.0
  %314 = vmatpush2.msra.mxu0 0.0
  %315 = vmatprep.subr.mxu0 0.0
  %316 = vmatpush2.msra.mxu0 0.0
  %317 = vmatprep.subr.mxu0 0.0
  %318 = vmatpush2.msra.mxu0 0.0
  %319 = vmatprep.subr.mxu0 0.0
  %320 = vmatpush2.msra.mxu0 0.0
  %321 = vmatprep.subr.mxu0 0.0
  %322 = vmatpush2.msra.mxu0 0.0
  %323 = vmatprep.subr.mxu0 0.0
  %324 = vmatpush2.msra.mxu0 0.0
  %325 = vmatprep.subr.mxu0 0.0
  %326 = vmatpush2.msra.mxu0 0.0
  %327 = vmatprep.subr.mxu0 0.0
  %328 = vmatpush2.msra.mxu0 0.0
  %329 = vmatprep.mubr.f32.mxu0 0.0
  %330 = vmatmul.mubr.f32.gmra.mxu0 %v260
  %v331 = vpop.f32.mrf.mxu0
  %v332 = vadd.f32 0.0, %v331
  %v333 = vpop.f32.mrf.mxu0
  %334 = vmatprep.mubr.f32.mxu0 0.0
  %335 = vmatmul.mubr.f32.gmra.mxu0 %v263
  %v336 = vpop.f32.mrf.mxu0
  %v337 = vadd.f32 0.0, %v336
  %v338 = vpop.f32.mrf.mxu0
  %339 = vdwg.mxu0
  %340 = vst [vmem:[%s2] sm:$0xff] %v11
  %341 = vst [vmem:[%s2 + $0x8] sm:$0xff] %v12
  %342 = vst [vmem:[%s2 + $0x10] sm:$0xff] %v332
  %343 = vst [vmem:[%s2 + $0x18] sm:$0xff] %v337
  // Predicated region
  $region10: #{encoder_forward.1} parent=0 // pred_check
    _
  $region11: #{encoder_forward.1} parent=0 // pred_check_branch
    %345 = sbr.rel (0) target = $region13
  $region12: #{encoder_forward.1} parent=0 // pred_region
    _
  $region13: #{encoder_forward.1} parent=0 // pred_fallthru
    _
  // Predicated region
  $region14: #{encoder_forward.1} parent=0 // pred_check
    _
  $region15: #{encoder_forward.1} parent=0 // pred_check_branch
    %347 = sbr.rel (0) target = $region17
  $region16: #{encoder_forward.1} parent=0 // pred_region
    _
  $region17: #{encoder_forward.1} parent=0 // pred_fallthru
    _

</llo_original>
